<compile_context>
chip_gen: v6e
topology: v6e:2x2x1
jax: 0.10.0
libtpu: 0.0.40
codegen_flags: <defaults>
</compile_context>

<pallas_src>
import functools

import numpy as np
import jax
import jax.numpy as jnp
from jax import lax
from jax.experimental import pallas as pl
from jax.experimental.pallas import tpu as pltpu


def _poset_g2g_kernel(feat_ref, cross_ref, out_ref, *, n, num_instances, K,
                      sigma, idx_bits):
    # ---- group means: (n, NI, D) -> (n, D) via a VPU sublane reduce --------
    feats = feat_ref[...].astype(jnp.float32)                      # (n, NI, D)
    g = jnp.sum(feats, axis=1) * (1.0 / num_instances)             # (n, D) f32

    # ---- squared norms ------------------------------------------------------
    gsq = g * g
    # column form |g_i|^2: VPU mul + lane reduce, overlaps with the MXU gram.
    sq_col = jnp.sum(gsq, axis=1, keepdims=True)                   # (n, 1)
    # row form |g_j|^2: 1-row MXU contraction (no transpose / diag masking).
    ones_row = jnp.ones((1, g.shape[1]), jnp.float32)
    sq_row = lax.dot_general(ones_row, gsq, (((1,), (1,)), ((), ())),
                             preferred_element_type=jnp.float32)   # (1, n)

    # ---- pairwise distances / similarities ---------------------------------
    gram = lax.dot_general(g, g, (((1,), (1,)), ((), ())),
                           preferred_element_type=jnp.float32)     # (n, n)
    dist2 = sq_col + sq_row - 2.0 * gram
    dist = jnp.sqrt(jnp.maximum(dist2, 1e-12))
    exp_dist = jnp.exp(dist * (-1.0 / (2.0 * sigma)))              # (n, n), (0, 1]

    dist_all = jnp.sum(exp_dist, axis=1, keepdims=True)            # (n, 1)

    # ---- top-K cross-camera similarities per row ----------------------------
    # Pack (value, column) into one ordered int32 key: bits of a positive f32
    # order as a (positive) int; the low `idx_bits` mantissa bits are replaced
    # by (n-1-col), so a single signed-int max per step yields both the max
    # value (truncated in the low mantissa bits, <= ~1e-6 rel. error) and a
    # unique element to remove.  Non-cross-camera / removed entries get a key
    # below every valid key.
    col_iota = lax.broadcasted_iota(jnp.int32, (n, n), 1)
    col_rev = (n - 1) - col_iota
    low = (1 << idx_bits) - 1
    keep_mask = jnp.int32(~low)                                    # ...11111000
    neg_key = jnp.int32(jnp.iinfo(jnp.int32).min)

    val_bits = pltpu.bitcast(exp_dist, jnp.int32)
    keys = (val_bits & keep_mask) | col_rev
    cross = cross_ref[...] != 0                                    # (n, n) bool
    keys = jnp.where(cross, keys, neg_key)

    sum_k = jnp.zeros((n, 1), jnp.float32)
    for _ in range(K):                       # K is tiny & static -> unrolled
        kmax = jnp.max(keys, axis=1, keepdims=True)                # (n, 1)
        vmax = pltpu.bitcast(kmax & keep_mask, jnp.float32)
        # Rows with fewer than K cross-camera entries contribute 0 for the
        # missing slots (reference sums only the available entries).
        sum_k = sum_k + jnp.maximum(vmax, 0.0)
        keys = jnp.where(keys == kmax, neg_key, keys)

    quotient = sum_k / dist_all
    neg_log = -jnp.log(quotient)                                   # (n, 1)
    out_ref[...] = jnp.sum(neg_log, axis=0, keepdims=True) * (1.0 / n)


def poset_loss_g2g(batch_features, labels, camid, sigma=4.0):
    """JAX/Pallas equivalent of PosetLoss_G2G.forward.

    `labels` is accepted for API parity but (as in the PyTorch module) does not
    influence the loss value.  Group structure (num_instances, group_num,
    task_num, K) is derived on the host from `camid`, exactly like the Python
    loops in the PyTorch forward.
    """
    del labels  # unused by the loss, matching the reference module
    camid_np = np.asarray(camid)
    sample_num, dim = batch_features.shape
    task_num = len(set(camid_np.tolist()))
    num_instances = 0
    for c in camid_np:
        if c == camid_np[0]:
            num_instances += 1
        else:
            break
    group_num = sample_num // num_instances
    K = task_num // 2

    # Per-group camera id and host-precomputed (n, n) cross-camera mask.
    group_camid = camid_np.reshape(group_num, num_instances)[:, 0]
    cross = (group_camid[None, :] != group_camid[:, None]).astype(np.int32)

    # Keep the native feature dtype; reshape (free, metadata only) so the
    # kernel can do the group mean as a sublane reduce instead of a matmul
    # against a mostly-zero averaging matrix.
    feats = jnp.asarray(batch_features)
    feats3 = feats.reshape(group_num, num_instances, dim)

    idx_bits = max(1, (group_num - 1).bit_length())

    kernel = functools.partial(
        _poset_g2g_kernel, n=group_num, num_instances=num_instances, K=K,
        sigma=float(sigma), idx_bits=idx_bits)

    # Single invocation, whole arrays in VMEM (no pipeline, no double buffer).
    feat_bytes = int(feats.size) * int(feats.dtype.itemsize)
    vmem_limit = int(min(64 * 2**20, max(8 * 2**20, 2 * feat_bytes + 2**20)))

    out = pl.pallas_call(
        kernel,
        out_shape=jax.ShapeDtypeStruct((1, 1), jnp.float32),
        compiler_params=pltpu.CompilerParams(vmem_limit_bytes=vmem_limit),
    )(feats3, jnp.asarray(cross))
    return out[0, 0]


def _reference_numpy(feats, camid, sigma=4.0):
    """Straight numpy port of the PyTorch forward, for validation."""
    feats = np.asarray(feats, np.float64)
    camid = np.asarray(camid)
    sample_num, dim = feats.shape
    task_num = len(set(camid.tolist()))
    num_instances = 0
    for c in camid:
        if c == camid[0]:
            num_instances += 1
        else:
            break
    group_num = sample_num // num_instances
    K = task_num // 2
    g = feats.reshape(group_num, num_instances, dim).mean(axis=1)
    gc = camid.reshape(group_num, num_instances)[:, 0]
    sq = (g ** 2).sum(axis=1)
    d2 = sq[:, None] + sq[None, :] - 2.0 * (g @ g.T)
    dist = np.sqrt(np.clip(d2, 1e-12, None))
    e = np.exp(-dist / (2.0 * sigma))
    near = np.zeros(group_num)
    for i in range(group_num):
        cross = np.sort(e[i][gc != gc[i]])[::-1]
        near[i] = cross[:K].sum()
    dall = e.sum(axis=1)
    return float((-np.log(near / dall)).sum() / group_num)


if __name__ == "__main__":
    key = jax.random.PRNGKey(0)
    sample_num, dim, num_instances = 16, 32, 2
    batch_features = jax.random.normal(key, (sample_num, dim), jnp.float32)
    # camid: constant within each consecutive group of `num_instances` samples.
    camid = np.array([0, 0, 1, 1, 2, 2, 3, 3, 0, 0, 1, 1, 2, 2, 3, 3], np.int32)
    labels = np.arange(sample_num, dtype=np.int32)  # unused by the loss

    loss = poset_loss_g2g(batch_features, labels, camid)
    loss = jax.block_until_ready(loss)

    ref = _reference_numpy(np.asarray(batch_features), camid)
    assert np.isfinite(float(loss)), "loss is not finite"
    assert float(loss) >= 0.0, "poset loss must be non-negative"
    assert abs(float(loss) - ref) < 1e-3, f"mismatch: {float(loss)} vs {ref}"
    print("KERNEL_OK")
</pallas_src>

<mosaic_0001>
module attributes {stable_mosaic.version = 11 : i64} {
  func.func @_poset_g2g_kernel(%arg0: memref<8x2x32xf32, #tpu.memory_space<vmem>>, %arg1: memref<8x8xi32, #tpu.memory_space<vmem>>, %arg2: memref<1x1xf32, #tpu.memory_space<vmem>>) attributes {dimension_semantics = [], scalar_prefetch = 0 : i64, scratch_operands = 0 : i64, tpu.core_type = #tpu.core_type<tc>} {
    %c0 = arith.constant 0 : index
    %c0_0 = arith.constant 0 : index
    %c0_1 = arith.constant 0 : index
    %0 = vector.load %arg0[%c0, %c0_0, %c0_1] : memref<8x2x32xf32, #tpu.memory_space<vmem>>, vector<8x2x32xf32>
    %cst = arith.constant dense<0.000000e+00> : vector<8x32xf32>
    %1 = vector.multi_reduction <add>, %0, %cst [1] : vector<8x2x32xf32> to vector<8x32xf32>
    %cst_2 = arith.constant 5.000000e-01 : f32
    %2 = vector.broadcast %cst_2 : f32 to vector<8x32xf32>
    %3 = arith.mulf %1, %2 : vector<8x32xf32>
    %4 = arith.mulf %3, %3 : vector<8x32xf32>
    %cst_3 = arith.constant dense<0.000000e+00> : vector<8xf32>
    %5 = vector.multi_reduction <add>, %4, %cst_3 [1] : vector<8x32xf32> to vector<8xf32>
    %6 = vector.shape_cast %5 : vector<8xf32> to vector<8x1xf32>
    %cst_4 = arith.constant 1.000000e+00 : f32
    %7 = vector.broadcast %cst_4 : f32 to vector<1x32xf32>
    %cst_5 = arith.constant dense<0.000000e+00> : vector<1x8xf32>
    %8 = tpu.matmul %7, %4, %cst_5 {dimension_numbers = #tpu.dot_dimension_numbers<[1], [1], [0], [0], [0, 0, 1, 0], [], []>} : vector<1x32xf32>, vector<8x32xf32>, vector<1x8xf32> -> vector<1x8xf32>
    %cst_6 = arith.constant dense<0.000000e+00> : vector<8x8xf32>
    %9 = tpu.matmul %3, %3, %cst_6 {dimension_numbers = #tpu.dot_dimension_numbers<[1], [1], [0], [0], [0, 0, 1, 0], [], []>} : vector<8x32xf32>, vector<8x32xf32>, vector<8x8xf32> -> vector<8x8xf32>
    %10 = vector.broadcast %6 : vector<8x1xf32> to vector<8x8xf32>
    %11 = vector.broadcast %8 : vector<1x8xf32> to vector<8x8xf32>
    %12 = arith.addf %10, %11 : vector<8x8xf32>
    %cst_7 = arith.constant 2.000000e+00 : f32
    %13 = vector.broadcast %cst_7 : f32 to vector<8x8xf32>
    %14 = arith.mulf %13, %9 : vector<8x8xf32>
    %15 = arith.subf %12, %14 : vector<8x8xf32>
    %cst_8 = arith.constant 9.99999996E-13 : f32
    %16 = vector.broadcast %cst_8 : f32 to vector<8x8xf32>
    %17 = arith.maximumf %15, %16 : vector<8x8xf32>
    %18 = math.sqrt %17 : vector<8x8xf32>
    %cst_9 = arith.constant -1.250000e-01 : f32
    %19 = vector.broadcast %cst_9 : f32 to vector<8x8xf32>
    %20 = arith.mulf %18, %19 : vector<8x8xf32>
    %21 = math.exp %20 : vector<8x8xf32>
    %cst_10 = arith.constant dense<0.000000e+00> : vector<8xf32>
    %22 = vector.multi_reduction <add>, %21, %cst_10 [1] : vector<8x8xf32> to vector<8xf32>
    %23 = vector.shape_cast %22 : vector<8xf32> to vector<8x1xf32>
    %24 = tpu.iota {dimensions = array<i32: 1>} : vector<8x8xi32>
    %c7_i32 = arith.constant 7 : i32
    %25 = vector.broadcast %c7_i32 : i32 to vector<8x8xi32>
    %26 = arith.subi %25, %24 : vector<8x8xi32>
    %27 = tpu.bitcast %21 : vector<8x8xf32> -> vector<8x8xi32>
    %c-8_i32 = arith.constant -8 : i32
    %28 = vector.broadcast %c-8_i32 : i32 to vector<8x8xi32>
    %29 = arith.andi %27, %28 : vector<8x8xi32>
    %30 = arith.ori %29, %26 : vector<8x8xi32>
    %c0_11 = arith.constant 0 : index
    %c0_12 = arith.constant 0 : index
    %31 = vector.load %arg1[%c0_11, %c0_12] : memref<8x8xi32, #tpu.memory_space<vmem>>, vector<8x8xi32>
    %c0_i32 = arith.constant 0 : i32
    %32 = vector.broadcast %c0_i32 : i32 to vector<8x8xi32>
    %33 = arith.cmpi ne, %31, %32 : vector<8x8xi32>
    %c-2147483648_i32 = arith.constant -2147483648 : i32
    %34 = vector.broadcast %c-2147483648_i32 : i32 to vector<8x8xi32>
    %35 = arith.select %33, %30, %34 : vector<8x8xi1>, vector<8x8xi32>
    %cst_13 = arith.constant 0.000000e+00 : f32
    %36 = vector.broadcast %cst_13 : f32 to vector<8x1xf32>
    %cst_14 = arith.constant dense<-2147483648> : vector<8xi32>
    %37 = vector.multi_reduction <maxsi>, %35, %cst_14 [1] : vector<8x8xi32> to vector<8xi32>
    %38 = vector.shape_cast %37 : vector<8xi32> to vector<8x1xi32>
    %c-8_i32_15 = arith.constant -8 : i32
    %39 = vector.broadcast %c-8_i32_15 : i32 to vector<8x1xi32>
    %40 = arith.andi %38, %39 : vector<8x1xi32>
    %41 = tpu.bitcast %40 : vector<8x1xi32> -> vector<8x1xf32>
    %cst_16 = arith.constant 0.000000e+00 : f32
    %42 = vector.broadcast %cst_16 : f32 to vector<8x1xf32>
    %43 = arith.maximumf %41, %42 : vector<8x1xf32>
    %44 = arith.addf %36, %43 : vector<8x1xf32>
    %45 = vector.broadcast %38 : vector<8x1xi32> to vector<8x8xi32>
    %46 = arith.cmpi eq, %35, %45 : vector<8x8xi32>
    %c-2147483648_i32_17 = arith.constant -2147483648 : i32
    %47 = vector.broadcast %c-2147483648_i32_17 : i32 to vector<8x8xi32>
    %48 = arith.select %46, %47, %35 : vector<8x8xi1>, vector<8x8xi32>
    %cst_18 = arith.constant dense<-2147483648> : vector<8xi32>
    %49 = vector.multi_reduction <maxsi>, %48, %cst_18 [1] : vector<8x8xi32> to vector<8xi32>
    %50 = vector.shape_cast %49 : vector<8xi32> to vector<8x1xi32>
    %c-8_i32_19 = arith.constant -8 : i32
    %51 = vector.broadcast %c-8_i32_19 : i32 to vector<8x1xi32>
    %52 = arith.andi %50, %51 : vector<8x1xi32>
    %53 = tpu.bitcast %52 : vector<8x1xi32> -> vector<8x1xf32>
    %cst_20 = arith.constant 0.000000e+00 : f32
    %54 = vector.broadcast %cst_20 : f32 to vector<8x1xf32>
    %55 = arith.maximumf %53, %54 : vector<8x1xf32>
    %56 = arith.addf %44, %55 : vector<8x1xf32>
    %57 = arith.divf %56, %23 : vector<8x1xf32>
    %58 = math.log %57 : vector<8x1xf32>
    %cst_21 = arith.constant 0.000000e+00 : f32
    %59 = vector.broadcast %cst_21 : f32 to vector<8x1xf32>
    %60 = arith.subf %59, %58 : vector<8x1xf32>
    %cst_22 = arith.constant dense<0.000000e+00> : vector<1xf32>
    %61 = vector.multi_reduction <add>, %60, %cst_22 [0] : vector<8x1xf32> to vector<1xf32>
    %62 = vector.shape_cast %61 : vector<1xf32> to vector<1x1xf32>
    %cst_23 = arith.constant 1.250000e-01 : f32
    %63 = vector.broadcast %cst_23 : f32 to vector<1x1xf32>
    %64 = arith.mulf %62, %63 : vector<1x1xf32>
    %c0_24 = arith.constant 0 : index
    %c0_25 = arith.constant 0 : index
    %65 = vector.load %arg2[%c0_24, %c0_25] : memref<1x1xf32, #tpu.memory_space<vmem>>, vector<1x1xf32>
    tpu.vector_store %arg2[%c0_24, %c0_25], %64 {strides = array<i32>} : memref<1x1xf32, #tpu.memory_space<vmem>>, vector<1x1xf32>,
    return
  }
}

</mosaic_0001>

<llo_original>
// kernel: tpu_custom_call.1
$region0: #{tpu_custom_call.1}
  #allocation0 [shape = 'u32[]', space=smem, size = 0x4, offset = 0x4, fixed_abs, tag = 'smem constant byte address 0x4 - core index']
  #allocation1 [shape = 'u32[144,128]{1,0:T(1,128)}', space=vmem, size = 0x12000, scoped, tag = 'internal scratch']
  %s0 = inlined_call_operand.hbm [shape: f32[8,2,32], index: 0, kind: input, shape index: {}]
  %s1 = inlined_call_operand.hbm [shape: s32[8,8], index: 1, kind: input, shape index: {}]
  %s2 = inlined_call_operand.hbm [shape: f32[1,1], index: 2, kind: output, shape index: {}]
  %s3 = sld [smem:[#allocation0]]
  $region26: #{tpu_custom_call.1} parent=0
    _
  %s5 = ssub.s32 1, %s3
  %s6 = scalar_select 0, %s5, %s3
  $region1: #{tpu_custom_call.1} parent=0
    #allocation2 [shape = 'u8[8192]{0}', space=vmem, size = 0x2000, scoped, tag = 'input window, operand 0, single buffered']
    #allocation3 [shape = 's32[1]{0}', space=sflag, size = 0x4, scoped, tag = 'scoped memory for tpu_custom_call.1']
    #allocation4 [shape = 's32[1]{0}', space=sflag, size = 0x4, scoped, tag = 'scoped memory for tpu_custom_call.1']
    #allocation5 [shape = 'u8[4096]{0}', space=vmem, size = 0x1000, scoped, tag = 'input window, operand 1, single buffered']
    #allocation6 [shape = 's32[1]{0}', space=sflag, size = 0x4, scoped, tag = 'scoped memory for tpu_custom_call.1']
    #allocation7 [shape = 'u8[512]{0}', space=vmem, size = 0x400, scoped, tag = 'output window, operand 0, single buffered']
    %7 = vsyncpa [#allocation3], 0
    %8 = vsyncpa [#allocation6], 0
    %9 = vsyncpa [#allocation4], 0
    // Predicated region
    $region2: #{tpu_custom_call.1} parent=1 // pred_check
      _
    $region3: #{tpu_custom_call.1} parent=1 // pred_check_branch
      %11 = sbr.rel (0) target = $region5
    $region4: #{tpu_custom_call.1} parent=1 // pred_region
      %s13 = ssub.s32 256, 256
      %14 = vsyncadd [#allocation3], %s13
      %s15 = sshll.u32 [#allocation2], 4
      %s16 = int_to_ptr.vmem [resolvable:$true] %s15
      %21 = dma.hbm_to_vmem [thread:$0]  %s0, 256, %s16, [#allocation3], 32, 32, 2
    $region5: #{tpu_custom_call.1} parent=1 // pred_fallthru
      _
    // Predicated region
    $region6: #{tpu_custom_call.1} parent=1 // pred_check
      _
    $region7: #{tpu_custom_call.1} parent=1 // pred_check_branch
      %23 = sbr.rel (0) target = $region9
    $region8: #{tpu_custom_call.1} parent=1 // pred_region
      %s25 = ssub.s32 128, 128
      %26 = vsyncadd [#allocation6], %s25
      %s28 = sshll.u32 [#allocation5], 4
      %s29 = int_to_ptr.vmem [resolvable:$true] %s28
      %31 = dma.hbm_to_vmem [thread:$0]  %s1, 128, %s29, [#allocation6]
    $region9: #{tpu_custom_call.1} parent=1 // pred_fallthru
      _
    // Predicated region
    $region10: #{tpu_custom_call.1} parent=1 // pred_check
      _
    $region11: #{tpu_custom_call.1} parent=1 // pred_check_branch
      %33 = sbr.rel (0) target = $region13
    $region12: #{tpu_custom_call.1} parent=1 // pred_region
      %34 = dma.done [#allocation3], 256
    $region13: #{tpu_custom_call.1} parent=1 // pred_fallthru
      _
    // Predicated region
    $region14: #{tpu_custom_call.1} parent=1 // pred_check
      _
    $region15: #{tpu_custom_call.1} parent=1 // pred_check_branch
      %36 = sbr.rel (0) target = $region17
    $region16: #{tpu_custom_call.1} parent=1 // pred_region
      %37 = dma.done [#allocation6], 128
    $region17: #{tpu_custom_call.1} parent=1 // pred_fallthru
      _
    %v38 = vld [vmem:[#allocation2] sm:$0x3]
    %v39 = vld [vmem:[#allocation2 + $0x2] sm:$0x3]
    %v40 = vld [vmem:[#allocation2 + $0x4] sm:$0x3]
    %v41 = vld [vmem:[#allocation2 + $0x6] sm:$0x3]
    %v42 = vld [vmem:[#allocation2 + $0x8] sm:$0x3]
    %v43 = vld [vmem:[#allocation2 + $0xa] sm:$0x3]
    %v44 = vld [vmem:[#allocation2 + $0xc] sm:$0x3]
    %v45 = vld [vmem:[#allocation2 + $0xe] sm:$0x3]
    %vm46 = vcmask 254976
    %v47 = vsel %vm46, %v38, 0.0
    %v48 = vrot.slane %v47, 4
    %v49 = vadd.f32 %v47, %v48
    %v50 = vrot.slane %v49, 2
    %v51 = vadd.f32 %v49, %v50
    %v52 = vrot.slane %v51, 1
    %v53 = vadd.f32 %v51, %v52
    %v54 = vsel %vm46, %v39, 0.0
    %v55 = vrot.slane %v54, 4
    %v56 = vadd.f32 %v54, %v55
    %v57 = vrot.slane %v56, 2
    %v58 = vadd.f32 %v56, %v57
    %v59 = vrot.slane %v58, 1
    %v60 = vadd.f32 %v58, %v59
    %v61 = vsel %vm46, %v40, 0.0
    %v62 = vrot.slane %v61, 4
    %v63 = vadd.f32 %v61, %v62
    %v64 = vrot.slane %v63, 2
    %v65 = vadd.f32 %v63, %v64
    %v66 = vrot.slane %v65, 1
    %v67 = vadd.f32 %v65, %v66
    %v68 = vsel %vm46, %v41, 0.0
    %v69 = vrot.slane %v68, 4
    %v70 = vadd.f32 %v68, %v69
    %v71 = vrot.slane %v70, 2
    %v72 = vadd.f32 %v70, %v71
    %v73 = vrot.slane %v72, 1
    %v74 = vadd.f32 %v72, %v73
    %v75 = vsel %vm46, %v42, 0.0
    %v76 = vrot.slane %v75, 4
    %v77 = vadd.f32 %v75, %v76
    %v78 = vrot.slane %v77, 2
    %v79 = vadd.f32 %v77, %v78
    %v80 = vrot.slane %v79, 1
    %v81 = vadd.f32 %v79, %v80
    %v82 = vsel %vm46, %v43, 0.0
    %v83 = vrot.slane %v82, 4
    %v84 = vadd.f32 %v82, %v83
    %v85 = vrot.slane %v84, 2
    %v86 = vadd.f32 %v84, %v85
    %v87 = vrot.slane %v86, 1
    %v88 = vadd.f32 %v86, %v87
    %v89 = vsel %vm46, %v44, 0.0
    %v90 = vrot.slane %v89, 4
    %v91 = vadd.f32 %v89, %v90
    %v92 = vrot.slane %v91, 2
    %v93 = vadd.f32 %v91, %v92
    %v94 = vrot.slane %v93, 1
    %v95 = vadd.f32 %v93, %v94
    %v96 = vsel %vm46, %v45, 0.0
    %v97 = vrot.slane %v96, 4
    %v98 = vadd.f32 %v96, %v97
    %v99 = vrot.slane %v98, 2
    %v100 = vadd.f32 %v98, %v99
    %v101 = vrot.slane %v100, 1
    %v102 = vadd.f32 %v100, %v101
    %v103 = vmul.f32 %v53, 0.5
    %v104 = vmul.f32 %v60, 0.5
    %v105 = vmul.f32 %v67, 0.5
    %v106 = vmul.f32 %v74, 0.5
    %v107 = vmul.f32 %v81, 0.5
    %v108 = vmul.f32 %v88, 0.5
    %v109 = vmul.f32 %v95, 0.5
    %v110 = vmul.f32 %v102, 0.5
    %v111 = vmul.f32 %v103, %v103
    %v112 = vmul.f32 %v104, %v104
    %v113 = vmul.f32 %v105, %v105
    %v114 = vmul.f32 %v106, %v106
    %v115 = vmul.f32 %v107, %v107
    %v116 = vmul.f32 %v108, %v108
    %v117 = vmul.f32 %v109, %v109
    %v118 = vmul.f32 %v110, %v110
    %vm127 = vcmask 1041409
    %v128 = vsel %vm127, %v112, %v111
    %vm129 = vcmask 1042434
    %v130 = vsel %vm129, %v113, %v128
    %vm131 = vcmask 1043459
    %v132 = vsel %vm131, %v114, %v130
    %vm133 = vcmask 1044484
    %v134 = vsel %vm133, %v115, %v132
    %vm135 = vcmask 1045509
    %v136 = vsel %vm135, %v116, %v134
    %vm137 = vcmask 1046534
    %v138 = vsel %vm137, %v117, %v136
    %vm139 = vcmask 1047559
    %v140 = vsel %vm139, %v118, %v138
    %vm142 = vcmask 261120
    %v143 = vsel %vm142, %v140, 0.0
    %144 = vadd.xlane.f32.xlu0 %v143
    %v145 = vpop.xlane.xlu0 %144
    %v147 = vsel %vm142, 1.0, 0
    %v149 = vsel %vm142, %v140, 0
    %151 = vmatprep.subr.mxu0 0.0
    %152 = vmatpush1.xpose.msra.mxu0 0.0
    %153 = vmatprep.subr.mxu0 0.0
    %154 = vmatpush1.xpose.msra.mxu0 0.0
    %155 = vmatprep.subr.mxu0 0.0
    %156 = vmatpush1.xpose.msra.mxu0 0.0
    %157 = vmatprep.subr.mxu0 0.0
    %158 = vmatpush1.xpose.msra.mxu0 0.0
    %159 = vmatprep.subr.mxu0 0.0
    %160 = vmatpush1.xpose.msra.mxu0 0.0
    %161 = vmatprep.subr.mxu0 0.0
    %162 = vmatpush1.xpose.msra.mxu0 0.0
    %163 = vmatprep.subr.mxu0 0.0
    %164 = vmatpush1.xpose.msra.mxu0 0.0
    %165 = vmatprep.subr.mxu0 0.0
    %166 = vmatpush1.xpose.msra.mxu0 0.0
    %167 = vmatprep.subr.mxu0 0.0
    %168 = vmatpush1.xpose.msra.mxu0 0.0
    %169 = vmatprep.subr.mxu0 0.0
    %170 = vmatpush1.xpose.msra.mxu0 0.0
    %171 = vmatprep.subr.mxu0 0.0
    %172 = vmatpush1.xpose.msra.mxu0 0.0
    %173 = vmatprep.subr.mxu0 0.0
    %174 = vmatpush1.xpose.msra.mxu0 0.0
    %175 = vmatprep.subr.mxu0 0.0
    %176 = vmatpush1.xpose.msra.mxu0 0.0
    %177 = vmatprep.subr.mxu0 0.0
    %178 = vmatpush1.xpose.msra.mxu0 0.0
    %179 = vmatprep.subr.mxu0 0.0
    %180 = vmatpush1.xpose.msra.mxu0 0.0
    %181 = vmatprep.subr.mxu0 0.0
    %182 = vmatpush1.xpose.msra.mxu0 %v149
    %183 = vmatprep.subr.mxu0 0.0
    %184 = vmatpush2.xpose.msra.mxu0 0.0
    %185 = vmatprep.subr.mxu0 0.0
    %186 = vmatpush2.xpose.msra.mxu0 0.0
    %187 = vmatprep.subr.mxu0 0.0
    %188 = vmatpush2.xpose.msra.mxu0 0.0
    %189 = vmatprep.subr.mxu0 0.0
    %190 = vmatpush2.xpose.msra.mxu0 0.0
    %191 = vmatprep.subr.mxu0 0.0
    %192 = vmatpush2.xpose.msra.mxu0 0.0
    %193 = vmatprep.subr.mxu0 0.0
    %194 = vmatpush2.xpose.msra.mxu0 0.0
    %195 = vmatprep.subr.mxu0 0.0
    %196 = vmatpush2.xpose.msra.mxu0 0.0
    %197 = vmatprep.subr.mxu0 0.0
    %198 = vmatpush2.xpose.msra.mxu0 0.0
    %199 = vmatprep.subr.mxu0 0.0
    %200 = vmatpush2.xpose.msra.mxu0 0.0
    %201 = vmatprep.subr.mxu0 0.0
    %202 = vmatpush2.xpose.msra.mxu0 0.0
    %203 = vmatprep.subr.mxu0 0.0
    %204 = vmatpush2.xpose.msra.mxu0 0.0
    %205 = vmatprep.subr.mxu0 0.0
    %206 = vmatpush2.xpose.msra.mxu0 0.0
    %207 = vmatprep.subr.mxu0 0.0
    %208 = vmatpush2.xpose.msra.mxu0 0.0
    %209 = vmatprep.subr.mxu0 0.0
    %210 = vmatpush2.xpose.msra.mxu0 0.0
    %211 = vmatprep.subr.mxu0 0.0
    %212 = vmatpush2.xpose.msra.mxu0 0.0
    %213 = vmatprep.subr.mxu0 0.0
    %214 = vmatpush2.xpose.msra.mxu0 0.0
    %215 = vmatprep.mubr.f32.mxu0 0.0
    %216 = vmatmul.mubr.f32.gmra.mxu0 %v147
    %v217 = vpop.f32.mrf.mxu0
    %v218 = vadd.f32 0.0, %v217
    %v219 = vpop.f32.mrf.mxu0
    %220 = vdwg.mxu0
    %v229 = vsel %vm127, %v104, %v103
    %v230 = vsel %vm129, %v105, %v229
    %v231 = vsel %vm131, %v106, %v230
    %v232 = vsel %vm133, %v107, %v231
    %v233 = vsel %vm135, %v108, %v232
    %v234 = vsel %vm137, %v109, %v233
    %v235 = vsel %vm139, %v110, %v234
    %v236 = vsel %vm142, %v235, 0
    %238 = vmatprep.subr.mxu0 0.0
    %239 = vmatpush1.xpose.msra.mxu0 0.0
    %240 = vmatprep.subr.mxu0 0.0
    %241 = vmatpush1.xpose.msra.mxu0 0.0
    %242 = vmatprep.subr.mxu0 0.0
    %243 = vmatpush1.xpose.msra.mxu0 0.0
    %244 = vmatprep.subr.mxu0 0.0
    %245 = vmatpush1.xpose.msra.mxu0 0.0
    %246 = vmatprep.subr.mxu0 0.0
    %247 = vmatpush1.xpose.msra.mxu0 0.0
    %248 = vmatprep.subr.mxu0 0.0
    %249 = vmatpush1.xpose.msra.mxu0 0.0
    %250 = vmatprep.subr.mxu0 0.0
    %251 = vmatpush1.xpose.msra.mxu0 0.0
    %252 = vmatprep.subr.mxu0 0.0
    %253 = vmatpush1.xpose.msra.mxu0 0.0
    %254 = vmatprep.subr.mxu0 0.0
    %255 = vmatpush1.xpose.msra.mxu0 0.0
    %256 = vmatprep.subr.mxu0 0.0
    %257 = vmatpush1.xpose.msra.mxu0 0.0
    %258 = vmatprep.subr.mxu0 0.0
    %259 = vmatpush1.xpose.msra.mxu0 0.0
    %260 = vmatprep.subr.mxu0 0.0
    %261 = vmatpush1.xpose.msra.mxu0 0.0
    %262 = vmatprep.subr.mxu0 0.0
    %263 = vmatpush1.xpose.msra.mxu0 0.0
    %264 = vmatprep.subr.mxu0 0.0
    %265 = vmatpush1.xpose.msra.mxu0 0.0
    %266 = vmatprep.subr.mxu0 0.0
    %267 = vmatpush1.xpose.msra.mxu0 0.0
    %268 = vmatprep.subr.mxu0 0.0
    %269 = vmatpush1.xpose.msra.mxu0 %v236
    %270 = vmatprep.subr.mxu0 0.0
    %271 = vmatpush2.xpose.msra.mxu0 0.0
    %272 = vmatprep.subr.mxu0 0.0
    %273 = vmatpush2.xpose.msra.mxu0 0.0
    %274 = vmatprep.subr.mxu0 0.0
    %275 = vmatpush2.xpose.msra.mxu0 0.0
    %276 = vmatprep.subr.mxu0 0.0
    %277 = vmatpush2.xpose.msra.mxu0 0.0
    %278 = vmatprep.subr.mxu0 0.0
    %279 = vmatpush2.xpose.msra.mxu0 0.0
    %280 = vmatprep.subr.mxu0 0.0
    %281 = vmatpush2.xpose.msra.mxu0 0.0
    %282 = vmatprep.subr.mxu0 0.0
    %283 = vmatpush2.xpose.msra.mxu0 0.0
    %284 = vmatprep.subr.mxu0 0.0
    %285 = vmatpush2.xpose.msra.mxu0 0.0
    %286 = vmatprep.subr.mxu0 0.0
    %287 = vmatpush2.xpose.msra.mxu0 0.0
    %288 = vmatprep.subr.mxu0 0.0
    %289 = vmatpush2.xpose.msra.mxu0 0.0
    %290 = vmatprep.subr.mxu0 0.0
    %291 = vmatpush2.xpose.msra.mxu0 0.0
    %292 = vmatprep.subr.mxu0 0.0
    %293 = vmatpush2.xpose.msra.mxu0 0.0
    %294 = vmatprep.subr.mxu0 0.0
    %295 = vmatpush2.xpose.msra.mxu0 0.0
    %296 = vmatprep.subr.mxu0 0.0
    %297 = vmatpush2.xpose.msra.mxu0 0.0
    %298 = vmatprep.subr.mxu0 0.0
    %299 = vmatpush2.xpose.msra.mxu0 0.0
    %300 = vmatprep.subr.mxu0 0.0
    %301 = vmatpush2.xpose.msra.mxu0 0.0
    %302 = vmatprep.mubr.f32.mxu0 0.0
    %303 = vmatmul.mubr.f32.gmra.mxu0 %v236
    %v304 = vpop.f32.mrf.mxu0
    %v305 = vadd.f32 0.0, %v304
    %v306 = vpop.f32.mrf.mxu0
    %307 = vdwg.mxu0
    %v308 = vlaneseq
    %v309 = vshrl.u32 %v308, 7
    %v310 = vsub.s32 0, %v309
    %v311 = vrot.slane %v218, %v310
    %v312 = vadd.f32 %v145, %v311
    %v313 = vmul.f32 %v305, 2.0
    %v314 = vsub.f32 %v312, %v313
    %v315 = vmax.f32 %v314, 1e-12
    %v316 = vrsqrt.pop %v315
    %v317 = vmul.f32 %v315, %v316
    %vm318 = vcmp.eq.f32.partialorder %v315, inf
    %v319 = vsel %vm318, %v315, %v317
    %vm320 = vcmp.eq.f32.partialorder %v315, 0.0
    %v321 = vand.u32 %v315, 2147483648
    %v322 = vsel %vm320, %v321, %v319
    %v323 = vmul.f32 %v322, -0.125
    %v324 = vmul.f32 %v323, 1.442695
    %v325 = vpow.pop %v324
    %vm326 = vcmask 64512
    %v327 = vsel %vm326, %v325, 0.0
    %328 = vadd.xlane.f32.xlu0 %v327
    %v329 = vpop.xlane.xlu0 %328
    %v330 = vlaneseq
    %v331 = vand.u32 %v330, 127
    %v332 = vsub.s32 7, %v331
    %v334 = vand.u32 %v325, 4294967288
    %v335 = vor.u32 %v334, %v332
    %v336 = vld [vmem:[#allocation5] sm:$0xff]
    %vm337 = vcmp.ne.s32.totalorder %v336, 0
    %v338 = vsel %vm337, %v335, 2147483648
    %v339 = vsel %vm326, %v338, 2147483648
    %v340 = vand.u32 %v339, 65535
    %v341 = vshra.s32 %v339, 16
    %v342 = vcvt.s32.f32 %v340
    %v343 = vcvt.s32.f32 %v341
    %344 = vmax.xlane.f32.xlu0 %v343
    %v345 = vpop.xlane.xlu0 %344
    %vm346 = vcmp.eq.f32.partialorder %v343, %v345
    %v347 = vsel %vm346, %v342, -inf
    %348 = vmax.xlane.f32.xlu0 %v347
    %v349 = vpop.xlane.xlu0 %348
    %v350 = vcvt.f32.s32 %v349
    %v351 = vcvt.f32.s32 %v345
    %v352 = vshll.u32 %v351, 16
    %v353 = vadd.s32 %v352, %v350
    %v354 = vand.u32 %v353, 4294967288
    %v356 = vmax.f32 %v354, 0.0
    %v357 = vadd.f32 %v356, 0.0
    %vm358 = vcmp.eq.s32.totalorder %v338, %v353
    %v359 = vsel %vm358, 2147483648, %v338
    %v360 = vsel %vm326, %v359, 2147483648
    %v361 = vand.u32 %v360, 65535
    %v362 = vshra.s32 %v360, 16
    %v363 = vcvt.s32.f32 %v361
    %v364 = vcvt.s32.f32 %v362
    %365 = vmax.xlane.f32.xlu0 %v364
    %v366 = vpop.xlane.xlu0 %365
    %vm367 = vcmp.eq.f32.partialorder %v364, %v366
    %v368 = vsel %vm367, %v363, -inf
    %369 = vmax.xlane.f32.xlu0 %v368
    %v370 = vpop.xlane.xlu0 %369
    %v371 = vcvt.f32.s32 %v370
    %v372 = vcvt.f32.s32 %v366
    %v373 = vshll.u32 %v372, 16
    %v374 = vadd.s32 %v373, %v371
    %v375 = vand.u32 %v374, 4294967288
    %v377 = vmax.f32 %v375, 0.0
    %v378 = vadd.f32 %v357, %v377
    %v379 = vrcp.pop %v329
    %v380 = vmul.f32 %v378, %v379
    %v381 = vlog2.pop %v380
    %v382 = vmul.f32 %v381, 0.6931472
    %v383 = vsub.f32 0.0, %v382
    %v384 = vrot.slane %v383, 4
    %v385 = vadd.f32 %v383, %v384
    %v386 = vrot.slane %v385, 2
    %v387 = vadd.f32 %v385, %v386
    %v388 = vrot.slane %v387, 1
    %v389 = vadd.f32 %v387, %v388
    %v390 = vmul.f32 %v389, 0.125
    %vm391 = vcmask 0
    %392 = vst.msk [vmem:[#allocation7] sm:$0x1] %vm391, %v390
    // Predicated region
    $region18: #{tpu_custom_call.1} parent=1 // pred_check
      _
    $region19: #{tpu_custom_call.1} parent=1 // pred_check_branch
      %394 = sbr.rel (0) target = $region21
    $region20: #{tpu_custom_call.1} parent=1 // pred_region
      %s396 = ssub.s32 16, 16
      %397 = vsyncadd [#allocation4], %s396
      %s399 = sshll.u32 [#allocation7], 4
      %s400 = int_to_ptr.vmem [resolvable:$true] %s399
      %402 = dma.vmem_to_hbm [thread:$0]  %s400, 16, %s2, [#allocation4]
    $region21: #{tpu_custom_call.1} parent=1 // pred_fallthru
      _
    // Predicated region
    $region22: #{tpu_custom_call.1} parent=1 // pred_check
      _
    $region23: #{tpu_custom_call.1} parent=1 // pred_check_branch
      %404 = sbr.rel (0) target = $region25
    $region24: #{tpu_custom_call.1} parent=1 // pred_region
      %405 = dma.done [#allocation4], 16
    $region25: #{tpu_custom_call.1} parent=1 // pred_fallthru
      _
    %406 = vsyncpa [#allocation3], 1
    %407 = vsyncpa [#allocation6], 1
    %408 = vsyncpa [#allocation4], 1

</llo_original>
